<compile_context>
chip_gen: v5e
topology: v5e:2x2
jax: 0.10.0
libtpu: 0.0.40
codegen_flags: <defaults>
</compile_context>

<pallas_src>
import functools

import jax
import jax.numpy as jnp
import numpy as np
from jax.experimental import pallas as pl
from jax.experimental.pallas import tpu as pltpu


# ---------------------------------------------------------------------------
# Parameter generation (port of mushroom_rl.features.tensors uniform_grid)
# ---------------------------------------------------------------------------
def uniform_grid(n_centers, low, high, eta=0.25, cyclic=False):
    assert 0 < eta < 1.0
    n_features = len(low)
    w = np.zeros(n_features)
    c = list()
    tot_points = 1
    for i, n in enumerate(n_centers):
        start, end = low[i], high[i]
        if n == 1:
            w[i] = abs(end - start) / 2
            c.append(np.array([(start + end) / 2.0]))
        else:
            end_new = end - abs(end - start) / n if cyclic else end
            w[i] = (1 + eta) * abs(end_new - start) / n
            c.append(np.linspace(start, end_new, n))
        tot_points *= n
    n_rows, n_cols = 1, 0
    grid = np.zeros((tot_points, n_features))
    for discrete_values in c:
        i1 = 0
        for i in range(len(discrete_values)):
            for r in range(n_rows):
                idx_r = r + i * n_rows
                for cc in range(n_cols):
                    grid[idx_r, cc] = grid[r, cc]
                grid[idx_r, n_cols] = discrete_values[i1]
            i1 += 1
        n_cols += 1
        n_rows *= len(discrete_values)
    return grid, w


def gaussian_convert_to_scale(w):
    # GaussianRBFTensor._convert_to_scale
    return w ** 2 / 2.0


def _round_up(x, m):
    return ((x + m - 1) // m) * m


# ---------------------------------------------------------------------------
# Pallas kernel
# ---------------------------------------------------------------------------
def _rbf_kernel(xa_ref, mua_ref, out_ref, *, normalized):
    # xa_ref:  (TN, D+2)   [x, sum_d x^2/scale, 1]
    # mua_ref: (D+2, TK)   [2*mu.T/scale ; -1 ; -sum_d mu^2/scale]
    # out_ref: (TN, TK)
    #
    # exponent = 2*x.mu/s - x^2/s - mu^2/s = -(x - mu)^2 / s, all on the MXU.
    e = jnp.dot(xa_ref[...], mua_ref[...], preferred_element_type=jnp.float32)
    phi = jnp.exp(e)                                        # EUP
    if normalized:
        s = jnp.sum(phi, axis=-1, keepdims=True)            # XLU lane reduce
        inv = pl.reciprocal(s, approx=False)                 # EUP, off the VALU
        phi = jnp.where(s > 0.0, phi * inv, 0.0)             # 0/0 -> 0
    out_ref[...] = phi.astype(out_ref.dtype)


# ---------------------------------------------------------------------------
# Wrapper (GenericBasisTensor.forward, Gaussian basis)
# ---------------------------------------------------------------------------
def generic_basis_forward(x, mu, scale, dim=None, normalized=False,
                          out_dtype=jnp.float32,
                          k_tile=512, k_tile_threshold=1024):
    x = jnp.asarray(x, jnp.float32)
    if dim is not None:
        x = x[:, jnp.asarray(dim, jnp.int32)]               # torch.index_select(x, 1, dim)
    mu = jnp.asarray(mu, jnp.float32)
    scale = jnp.asarray(scale, jnp.float32).reshape(-1)

    N, D = x.shape
    K = mu.shape[0]
    assert mu.shape[1] == D and scale.shape[0] == D
    Dx = D + 2

    # --- Precompute augmented operands (hoisted out of the kernel) ----------
    inv_s = 1.0 / scale                                      # (D,)
    x_sq = jnp.sum(x * x * inv_s[None, :], axis=-1, keepdims=True)   # (N, 1)
    x_aug = jnp.concatenate(
        [x, x_sq, jnp.ones((N, 1), jnp.float32)], axis=-1)   # (N, Dx)

    mu_sq = jnp.sum(mu * mu * inv_s[None, :], axis=-1)       # (K,)
    mu_aug = jnp.concatenate(
        [(2.0 * mu * inv_s[None, :]).T,                      # (D, K)
         -jnp.ones((1, K), jnp.float32),                     # (1, K)
         -mu_sq[None, :]], axis=0)                           # -> (Dx, K)

    # --- K tiling (unnormalized only: normalization needs the full row) ----
    if (not normalized) and K > k_tile_threshold:
        tk = k_tile                                          # multiple of 128
        K_op = _round_up(K, tk)
        if K_op > K:
            # Sentinel padding: padded columns compute exp(-1e30) = 0 and are
            # never stored (output keeps its true K extent).
            pad = jnp.zeros((Dx, K_op - K), jnp.float32).at[Dx - 1, :].set(-1e30)
            mu_aug = jnp.concatenate([mu_aug, pad], axis=-1)
        k_grid = K_op // tk
    else:
        tk = K
        K_op = K
        k_grid = 1

    # --- Row tile: target ~2 MiB of output per step, bounded by VMEM -------
    out_itemsize = jnp.dtype(out_dtype).itemsize
    tn_target = _round_up(max(1, (2 << 20) // max(1, out_itemsize * tk)), 8)
    tn_target = max(256, min(4096, tn_target))

    # VMEM plan (per grid step): double-buffered x_aug + out tiles, resident
    # (double-buffered) mu_aug block, ~two (tn, tk) f32 Mosaic temps.
    fixed = 2 * 4 * Dx * tk
    per_row = 2 * 4 * Dx + 2 * out_itemsize * tk + 2 * 4 * tk
    budget = 20 << 20                                        # safe on v5e/v6e/v7x
    max_tn = max(8, ((budget - fixed) // per_row) // 8 * 8) if budget > fixed else 8

    tn = min(tn_target, max_tn, _round_up(N, 8))
    if N >= 16:
        # >= 2 grid steps along N so both v7x TensorCores get work.
        tn = min(tn, _round_up(pl.cdiv(N, 2), 8))
    tn = max(8, tn)
    n_grid = pl.cdiv(N, tn)

    planned = fixed + per_row * tn
    vmem_limit = int(min(max(planned + (8 << 20), 16 << 20), 32 << 20))

    # --- Grid / specs -------------------------------------------------------
    if k_grid == 1:
        grid = (n_grid,)
        in_specs = [
            pl.BlockSpec((tn, Dx), lambda i: (i, 0)),
            pl.BlockSpec((Dx, tk), lambda i: (0, 0)),        # grid-invariant
        ]
        out_spec = pl.BlockSpec((tn, tk), lambda i: (i, 0))
        dims = ("parallel",)
    else:
        grid = (n_grid, k_grid)
        in_specs = [
            pl.BlockSpec((tn, Dx), lambda i, j: (i, 0)),
            pl.BlockSpec((Dx, tk), lambda i, j: (0, j)),
        ]
        out_spec = pl.BlockSpec((tn, tk), lambda i, j: (i, j))
        dims = ("parallel", "parallel")

    kernel = functools.partial(_rbf_kernel, normalized=normalized)
    out = pl.pallas_call(
        kernel,
        out_shape=jax.ShapeDtypeStruct((N, K), out_dtype),   # true K: no slice
        grid_spec=pltpu.PrefetchScalarGridSpec(
            num_scalar_prefetch=0,
            grid=grid,
            in_specs=in_specs,
            out_specs=out_spec,
        ),
        compiler_params=pltpu.CompilerParams(
            dimension_semantics=dims,
            vmem_limit_bytes=vmem_limit),
    )(x_aug, mu_aug)

    if K == 1:
        out = out[:, 0]                                      # forward's squeeze(-1)
    return out


# ---------------------------------------------------------------------------
# Reference (plain JAX, mirrors the PyTorch forward literally)
# ---------------------------------------------------------------------------
def reference_forward(x, mu, scale, dim=None, normalized=False):
    x = jnp.asarray(x, jnp.float32)
    if dim is not None:
        x = x[:, jnp.asarray(dim, jnp.int32)]
    mu = jnp.asarray(mu, jnp.float32)
    scale = jnp.asarray(scale, jnp.float32)
    delta = x[:, None, :] - mu[None, :, :]                   # (N, K, D)
    phi = jnp.exp(-jnp.sum(delta ** 2 / scale, axis=-1))     # (N, K)
    if normalized:
        s = jnp.sum(phi, axis=-1, keepdims=True)
        phi = jnp.nan_to_num(phi / s, nan=0.0)
    return phi


if __name__ == "__main__":
    key = jax.random.PRNGKey(0)
    k0, k1, k2, k3, k4, k5, k6 = jax.random.split(key, 7)

    # --- Config 1: 4x4 uniformly spaced Gaussian RBFs over the 2 selected
    #     input dimensions [0, 2] of a 4-dimensional input.
    n_centers = [4, 4]
    low = np.array([-1.0, -1.0])
    high = np.array([1.0, 1.0])
    mu_np, w_np = uniform_grid(n_centers, low, high, eta=0.25, cyclic=False)
    scale_np = gaussian_convert_to_scale(w_np)               # (D,), broadcast over K
    dim = np.array([0, 2], dtype=np.int32)
    x1 = jax.random.uniform(k0, (16, 4), jnp.float32, minval=-1.0, maxval=1.0)

    for normalized in (False, True):
        out = jax.block_until_ready(
            generic_basis_forward(x1, mu_np, scale_np, dim=dim,
                                  normalized=normalized))
        ref = reference_forward(x1, mu_np, scale_np, dim=dim,
                                normalized=normalized)
        np.testing.assert_allclose(np.asarray(out), np.asarray(ref),
                                   rtol=1e-4, atol=1e-5)
        assert out.shape == (16, mu_np.shape[0])

    # --- Config 2: larger feature dim, small center count.
    D2, K2, N2 = 40, 24, 64
    mu2 = jax.random.uniform(k1, (K2, D2), jnp.float32, minval=-1.0, maxval=1.0)
    scale2 = jax.random.uniform(k2, (D2,), jnp.float32, minval=2.0, maxval=6.0)
    x2 = jax.random.uniform(k3, (N2, D2), jnp.float32, minval=-1.0, maxval=1.0)

    for normalized in (False, True):
        out = jax.block_until_ready(
            generic_basis_forward(x2, mu2, scale2, normalized=normalized))
        ref = reference_forward(x2, mu2, scale2, normalized=normalized)
        np.testing.assert_allclose(np.asarray(out), np.asarray(ref),
                                   rtol=1e-4, atol=1e-5)
        assert out.shape == (N2, K2)

    # bf16-output option (halves HBM write traffic).
    out_bf16 = jax.block_until_ready(
        generic_basis_forward(x2, mu2, scale2, normalized=False,
                              out_dtype=jnp.bfloat16))
    ref2 = reference_forward(x2, mu2, scale2, normalized=False)
    np.testing.assert_allclose(np.asarray(jnp.asarray(out_bf16, jnp.float32)),
                               np.asarray(ref2), rtol=2e-2, atol=1e-2)

    # --- Config 3: many centers -> exercises the K-tiled path (unnormalized,
    #     ragged last K block) and the large resident-K normalized fallback.
    D3, K3, N3 = 6, 1500, 64
    mu3 = jax.random.uniform(k4, (K3, D3), jnp.float32, minval=-1.0, maxval=1.0)
    scale3 = jax.random.uniform(k5, (D3,), jnp.float32, minval=2.0, maxval=6.0)
    x3 = jax.random.uniform(k6, (N3, D3), jnp.float32, minval=-1.0, maxval=1.0)

    for normalized in (False, True):
        out = jax.block_until_ready(
            generic_basis_forward(x3, mu3, scale3, normalized=normalized))
        ref = reference_forward(x3, mu3, scale3, normalized=normalized)
        np.testing.assert_allclose(np.asarray(out), np.asarray(ref),
                                   rtol=1e-4, atol=1e-5)
        assert out.shape == (N3, K3)

    print("KERNEL_OK")
</pallas_src>

<mosaic_0001>
module attributes {stable_mosaic.version = 11 : i64} {
  func.func @_rbf_kernel(%arg0: i32, %arg1: memref<8x4xf32, #tpu.memory_space<vmem>>, %arg2: memref<4x16xf32, #tpu.memory_space<vmem>>, %arg3: memref<8x16xf32, #tpu.memory_space<vmem>>) attributes {dimension_semantics = [#tpu.dimension_semantics<parallel>], iteration_bounds = array<i64: 2>, scalar_prefetch = 0 : i64, scratch_operands = 0 : i64, tpu.core_type = #tpu.core_type<tc>, window_params = [{transform_indices = @transform_0, window_bounds = array<i64: 8, 4>}, {pipeline_mode = #tpu.pipeline_mode<synchronous>, transform_indices = @transform_1, window_bounds = array<i64: 4, 16>}, {transform_indices = @transform_2, window_bounds = array<i64: 8, 16>}]} {
    %c0 = arith.constant 0 : index
    %c0_0 = arith.constant 0 : index
    %0 = vector.load %arg1[%c0, %c0_0] : memref<8x4xf32, #tpu.memory_space<vmem>>, vector<8x4xf32>
    %c0_1 = arith.constant 0 : index
    %c0_2 = arith.constant 0 : index
    %1 = vector.load %arg2[%c0_1, %c0_2] : memref<4x16xf32, #tpu.memory_space<vmem>>, vector<4x16xf32>
    %cst = arith.constant dense<0.000000e+00> : vector<8x16xf32>
    %2 = tpu.matmul %0, %1, %cst {dimension_numbers = #tpu.dot_dimension_numbers<[1], [0], [0], [1], [0, 0, 1, 1], [], []>} : vector<8x4xf32>, vector<4x16xf32>, vector<8x16xf32> -> vector<8x16xf32>
    %3 = math.exp %2 : vector<8x16xf32>
    %c0_3 = arith.constant 0 : index
    %c0_4 = arith.constant 0 : index
    %4 = vector.load %arg3[%c0_3, %c0_4] : memref<8x16xf32, #tpu.memory_space<vmem>>, vector<8x16xf32>
    tpu.vector_store %arg3[%c0_3, %c0_4], %3 {strides = array<i32>} : memref<8x16xf32, #tpu.memory_space<vmem>>, vector<8x16xf32>,
    return
  }
  func.func @transform_0(%arg0: i32) -> (i32, i32) {
    %c0_i32 = arith.constant 0 : i32
    %c0_i32_0 = arith.constant 0 : i32
    return %arg0, %c0_i32 : i32, i32
  }
  func.func @transform_1(%arg0: i32) -> (i32, i32) {
    %c0_i32 = arith.constant 0 : i32
    %c0_i32_0 = arith.constant 0 : i32
    %c0_i32_1 = arith.constant 0 : i32
    return %c0_i32, %c0_i32_0 : i32, i32
  }
  func.func @transform_2(%arg0: i32) -> (i32, i32) {
    %c0_i32 = arith.constant 0 : i32
    %c0_i32_0 = arith.constant 0 : i32
    return %arg0, %c0_i32 : i32, i32
  }
}

</mosaic_0001>

<llo_original>
// kernel: tpu_custom_call.1
$region0: #{tpu_custom_call.1}
  #allocation0 [shape = 'u32[]', space=smem, size = 0x4, offset = 0x4, fixed_abs, tag = 'smem constant byte address 0x4 - core index']
  #allocation1 [shape = 'u32[72,128]{1,0:T(1,128)}', space=vmem, size = 0x9000, scoped, tag = 'internal scratch']
  %s0 = inlined_call_operand.vmem [shape: f32[16,4], index: 0, kind: input, shape index: {}]
  %s1 = inlined_call_operand.vmem [shape: f32[4,16], index: 1, kind: input, shape index: {}]
  %s2 = inlined_call_operand.hbm [shape: f32[16,16], index: 2, kind: output, shape index: {}]
  %s3 = sld [smem:[#allocation0]]
  $region41: #{tpu_custom_call.1} parent=0
    _
  %s5 = ssub.s32 1, %s3
  %s6 = scalar_select 0, %s5, %s3
  $region1: #{tpu_custom_call.1} parent=0
    #allocation2 [shape = 'u8[8192]{0}', space=vmem, size = 0x2000, scoped, tag = 'output window, operand 0']
    #allocation3 [shape = 's32[2]{0}', space=sflag, size = 0x8, scoped, tag = 'scoped memory for tpu_custom_call.1']
    %7 = vsyncpa [#allocation3], 0
    %s8 = scalar_lea.sflag [#allocation3], 1
    %9 = vsyncpa %s8, 0
    loop: start=0, step=1, limit=4
    $region2: #{tpu_custom_call.1} parent=1 // loop_pre_header
      _
    $region3: #{tpu_custom_call.1} parent=1 // loop_header
      %s11 = sphi 0, %s15
      %p12 = scmp.ge.s32.totalorder %s11, 4
      %s21 = sphi 0, %s23
      %s24 = sphi 0, %s21
      %s25 = sphi 0, %s24
      %s41 = sphi 0, %s25
      %s45 = sphi 0, %s45
      %s47 = sphi 0, %s45
      %s48 = sphi 0, %s47
      %s62 = sphi 0, %s48
      %s68 = sphi 0, %s70
      %s71 = sphi 0, %s68
      %s72 = sphi 0, %s71
      %s88 = sphi 0, %s72
    $region4: #{tpu_custom_call.1} parent=1 // loop_header_branch
      %14 = sbr.rel (%p12) target = $region8
    $region5: #{tpu_custom_call.1} parent=1 // loop_body
      %s16 = ssub.s32 %s11, 1
      %s17 = ssub.s32 %s11, 2
      %s18 = sadd.s32 %s11, 1
      %s19 = ssub.s32 %s11, %s18
      %p20 = scmp.eq.s32.totalorder %s19, 0
      %s22 = sadd.s32 %s21, 1
      %s23 = scalar_select %p20, %s21, %s22
      %p26 = pneg %p20
      %p27 = scmp.eq.s32.totalorder %s11, 1
      %p28 = por %p26, %p27
      %p29 = scmp.ne.s32.totalorder %s21, %s24
      %p30 = scmp.eq.s32.totalorder %s11, 0
      %p31 = por %p29, %p30
      %p32 = scmp.ne.s32.totalorder %s21, %s24
      %p33 = scmp.eq.s32.totalorder %s16, 1
      %p34 = por %p32, %p33
      %p35 = scmp.ne.s32.totalorder %s24, %s25
      %p36 = scmp.eq.s32.totalorder %s16, 0
      %p37 = por %p35, %p36
      %p38 = scmp.ne.s32.totalorder %s24, %s25
      %p39 = scmp.eq.s32.totalorder %s17, 1
      %p40 = por %p38, %p39
      %p42 = scmp.ne.s32.totalorder %s25, %s41
      %p43 = scmp.eq.s32.totalorder %s17, 0
      %p44 = por %p42, %p43
      %s46 = sadd.s32 %s45, 1
      %p49 = scmp.eq.s32.totalorder %s11, 1
      %p50 = scmp.ne.s32.totalorder %s45, %s47
      %p51 = scmp.eq.s32.totalorder %s11, 0
      %p52 = por %p50, %p51
      %p53 = scmp.ne.s32.totalorder %s45, %s47
      %p54 = scmp.eq.s32.totalorder %s16, 1
      %p55 = por %p53, %p54
      %p56 = scmp.ne.s32.totalorder %s47, %s48
      %p57 = scmp.eq.s32.totalorder %s16, 0
      %p58 = por %p56, %p57
      %p59 = scmp.ne.s32.totalorder %s47, %s48
      %p60 = scmp.eq.s32.totalorder %s17, 1
      %p61 = por %p59, %p60
      %p63 = scmp.ne.s32.totalorder %s48, %s62
      %p64 = scmp.eq.s32.totalorder %s17, 0
      %p65 = por %p63, %p64
      %s66 = ssub.s32 %s11, %s18
      %p67 = scmp.eq.s32.totalorder %s66, 0
      %s69 = sadd.s32 %s68, 1
      %s70 = scalar_select %p67, %s68, %s69
      %p73 = pneg %p67
      %p74 = scmp.eq.s32.totalorder %s11, 1
      %p75 = por %p73, %p74
      %p76 = scmp.ne.s32.totalorder %s68, %s71
      %p77 = scmp.eq.s32.totalorder %s11, 0
      %p78 = por %p76, %p77
      %p79 = scmp.ne.s32.totalorder %s68, %s71
      %p80 = scmp.eq.s32.totalorder %s16, 1
      %p81 = por %p79, %p80
      %p82 = scmp.ne.s32.totalorder %s71, %s72
      %p83 = scmp.eq.s32.totalorder %s16, 0
      %p84 = por %p82, %p83
      %p85 = scmp.ne.s32.totalorder %s71, %s72
      %p86 = scmp.eq.s32.totalorder %s17, 1
      %p87 = por %p85, %p86
      %p89 = scmp.ne.s32.totalorder %s72, %s88
      %p90 = scmp.eq.s32.totalorder %s17, 0
      %p91 = por %p89, %p90
      %p92 = scmp.le.s32.totalorder 1, %s11
      %p93 = scmp.lt.s32.totalorder %s11, 3
      %p94 = pnand %p92, %p93
      %p95 = pneg %p94
      // Predicated region
      $region9: #{tpu_custom_call.1} parent=5 // pred_check
        _
      $region10: #{tpu_custom_call.1} parent=5 // pred_check_branch
        %97 = sbr.rel (%p94) target = $region12
      $region11: #{tpu_custom_call.1} parent=5 // pred_region
        %s98 = ssub.s32 %s11, 1
        // Predicated region
        $region13: #{tpu_custom_call.1} parent=11 // pred_check
          %p99 = pneg %p58
        $region14: #{tpu_custom_call.1} parent=11 // pred_check_branch
          %101 = sbr.rel (%p99) target = $region16
        $region15: #{tpu_custom_call.1} parent=11 // pred_region
          _
        $region16: #{tpu_custom_call.1} parent=11 // pred_fallthru
          _
      $region12: #{tpu_custom_call.1} parent=5 // pred_fallthru
        _
      %p102 = scmp.lt.s32.totalorder %s11, 2
      // Predicated region
      $region17: #{tpu_custom_call.1} parent=5 // pred_check
        %p103 = pneg %p102
      $region18: #{tpu_custom_call.1} parent=5 // pred_check_branch
        %105 = sbr.rel (%p103) target = $region20
      $region19: #{tpu_custom_call.1} parent=5 // pred_region
        // Predicated region
        $region21: #{tpu_custom_call.1} parent=19 // pred_check
          %p106 = pneg %p31
        $region22: #{tpu_custom_call.1} parent=19 // pred_check_branch
          %108 = sbr.rel (%p106) target = $region24
        $region23: #{tpu_custom_call.1} parent=19 // pred_region
          %p109 = scmp.lt.s32.totalorder %s11, 1
          %s110 = scalar_select %p109, %s11, 1
          %s111 = smul.addr %s110, 8
          %s112 = scalar_lea.vmem %s0, %s111
        $region24: #{tpu_custom_call.1} parent=19 // pred_fallthru
          _
      $region20: #{tpu_custom_call.1} parent=5 // pred_fallthru
        _
      %p113 = scmp.le.s32.totalorder 1, %s11
      %p114 = scmp.lt.s32.totalorder %s11, 3
      %p115 = pnand %p113, %p114
      %p116 = pneg %p115
      // Predicated region
      $region25: #{tpu_custom_call.1} parent=5 // pred_check
        _
      $region26: #{tpu_custom_call.1} parent=5 // pred_check_branch
        %118 = sbr.rel (%p115) target = $region28
      $region27: #{tpu_custom_call.1} parent=5 // pred_region
        %s119 = ssub.s32 %s11, 1
        %p120 = scmp.lt.s32.totalorder %s16, 1
        %s121 = scalar_select %p120, %s16, 1
        %s122 = smul.addr %s121, 8
        %s123 = scalar_lea.vmem %s0, %s122
        %p124 = pneg %p37
        %p125 = pneg %p34
        %p126 = pneg %p58
        %p127 = pneg %p55
        %p128 = pneg %p84
        %p129 = pneg %p81
        %s130 = sand.u32 %s71, 1
        %s131 = scalar_lea.sflag [#allocation3], %s130
        %s132 = sand.u32 %s71, 1
        %s133 = smul.addr %s132, 8
        %s134 = scalar_lea.vmem [#allocation2], %s133
        %p135 = scmp.lt.s32.totalorder %s16, 1
        %s136 = scalar_select %p135, %s16, 1
        %s137 = smul.addr %s136, 8
        %s138 = scalar_lea.vmem %s0, %s137
        %v139 = vld [vmem:[%s138] sm:$0xff]
        %v140 = vld [vmem:[%s1] sm:$0xf]
        %vm141 = vcmask 31744
        %v143 = vsel %vm141, %v139, 0
        %vm145 = vcmask 1043456
        %v147 = vsel %vm145, %v140, 0
        %149 = vmatpush.msra.mxu0 0.0
        %150 = vmatpush.msra.mxu0 0.0
        %151 = vmatpush.msra.mxu0 0.0
        %152 = vmatpush.msra.mxu0 0.0
        %153 = vmatpush.msra.mxu0 0.0
        %154 = vmatpush.msra.mxu0 0.0
        %155 = vmatpush.msra.mxu0 0.0
        %156 = vmatpush.msra.mxu0 0.0
        %157 = vmatpush.msra.mxu0 0.0
        %158 = vmatpush.msra.mxu0 0.0
        %159 = vmatpush.msra.mxu0 0.0
        %160 = vmatpush.msra.mxu0 0.0
        %161 = vmatpush.msra.mxu0 0.0
        %162 = vmatpush.msra.mxu0 0.0
        %163 = vmatpush.msra.mxu0 0.0
        %164 = vmatpush.msra.mxu0 %v147
        %165 = vmatmul.f32.gmra.mxu0 %v143
        %v166 = vpop.f32.mrf.mxu0
        %v167 = vadd.f32 0.0, %v166
        %168 = vdwg.mxu0
        %v169 = vmul.f32 %v167, 1.442695
        %v170 = vpow.pop %v169
        %vm171 = vcmask 130048
        %172 = vst.msk [vmem:[%s134] sm:$0xff] %vm171, %v170
        %s173 = sand.u32 %s71, 1
        %s174 = scalar_lea.sflag [#allocation3], %s173
        %s175 = sand.u32 %s71, 1
        %s176 = smul.addr %s175, 8
        %s177 = scalar_lea.vmem [#allocation2], %s176
        // Predicated region
        $region29: #{tpu_custom_call.1} parent=27 // pred_check
          %p178 = pneg %p81
        $region30: #{tpu_custom_call.1} parent=27 // pred_check_branch
          %180 = sbr.rel (%p178) target = $region32
        $region31: #{tpu_custom_call.1} parent=27 // pred_region
          %182 = vsyncadd %s174, 0
          %s183 = smul.addr %s16, 8
          %s184 = scalar_lea.hbm %s2, %s183
          %s186 = sshll.u32 %s177, 4
          %s187 = int_to_ptr.vmem [resolvable:$true] %s186
          %s188 = sshll.u32 %s184, 4
          %s189 = int_to_ptr.hbm [resolvable:$true] %s188
          %191 = dma.vmem_to_hbm [thread:$0]  %s187, 128, %s189, %s174
        $region32: #{tpu_custom_call.1} parent=27 // pred_fallthru
          _
      $region28: #{tpu_custom_call.1} parent=5 // pred_fallthru
        _
      %p192 = scmp.le.s32.totalorder 2, %s11
      // Predicated region
      $region33: #{tpu_custom_call.1} parent=5 // pred_check
        %p193 = pneg %p192
      $region34: #{tpu_custom_call.1} parent=5 // pred_check_branch
        %195 = sbr.rel (%p193) target = $region36
      $region35: #{tpu_custom_call.1} parent=5 // pred_region
        %s196 = ssub.s32 %s11, 2
        // Predicated region
        $region37: #{tpu_custom_call.1} parent=35 // pred_check
          %p197 = pneg %p87
        $region38: #{tpu_custom_call.1} parent=35 // pred_check_branch
          %199 = sbr.rel (%p197) target = $region40
        $region39: #{tpu_custom_call.1} parent=35 // pred_region
          %s200 = sand.u32 %s72, 1
          %s201 = scalar_lea.sflag [#allocation3], %s200
          %s202 = sand.u32 %s72, 1
          %s203 = smul.addr %s202, 8
          %s204 = scalar_lea.vmem [#allocation2], %s203
          %206 = dma.done %s201, 128
        $region40: #{tpu_custom_call.1} parent=35 // pred_fallthru
          _
      $region36: #{tpu_custom_call.1} parent=5 // pred_fallthru
        _
    $region6: #{tpu_custom_call.1} parent=1 // loop_footer
      %s15 = sadd.s32 1, %s11
    $region7: #{tpu_custom_call.1} parent=1 // loop_footer_branch
      %10 = sbr.rel target = $region3
    $region8: #{tpu_custom_call.1} parent=1 // loop_exit
      _
    %207 = vsyncpa [#allocation3], 1
    %s208 = scalar_lea.sflag [#allocation3], 1
    %209 = vsyncpa %s208, 1

</llo_original>
